<compile_context>
chip_gen: v6e
topology: v6e:2x2x1
jax: 0.10.0
libtpu: 0.0.40
codegen_flags: <defaults>
</compile_context>

<pallas_src>
import functools
from typing import NamedTuple

import jax
import jax.numpy as jnp
from jax.experimental import pallas as pl
from jax.experimental.pallas import tpu as pltpu

BN_EPS = 1e-5
LANE = 128


def _round_up(n, m):
    return ((n + m - 1) // m) * m


# -----------------------------------------------------------------------------
# Kernel
# -----------------------------------------------------------------------------
def _persp_encoder_kernel(x_ref, wp_ref, gamma_ref, beta_ref,
                          wh_ref, bh_ref, wf_ref, bf_ref, out_ref):
    # Weights arrive already in their matmul dtype (f32 or bf16).  Only the
    # small (B, E) activation is cast down before each dot; accumulation is f32.
    w_dt = wp_ref.dtype

    # ---- proj: Linear(Din_pad -> E_pad); bias omitted (cancels in BN) ----
    y = jnp.dot(x_ref[...].astype(w_dt), wp_ref[...],
                preferred_element_type=jnp.float32)                 # (B, E_pad) f32

    # ---- 3 x [BatchNorm1d -> Linear -> ReLU] (unrolled, static slices) ----
    for i in range(3):
        mean = jnp.mean(y, axis=0, keepdims=True)                    # (1, E)
        d = y - mean                                                 # reused
        var = jnp.mean(d * d, axis=0, keepdims=True)                 # biased
        s = gamma_ref[i:i + 1, :] * jax.lax.rsqrt(var + BN_EPS)      # (1, E)
        y_bn = d * s + beta_ref[i:i + 1, :]
        h = jnp.dot(y_bn.astype(w_dt), wh_ref[i],
                    preferred_element_type=jnp.float32) + bh_ref[i:i + 1, :]
        y = jnp.maximum(h, 0.0)

    # ---- final Linear(E_pad -> E_pad); lane-dense (E_pad % 128 == 0) store ----
    out_ref[...] = (jnp.dot(y.astype(w_dt), wf_ref[...],
                            preferred_element_type=jnp.float32)
                    + bf_ref[...]).astype(out_ref.dtype)


# -----------------------------------------------------------------------------
# One-time parameter preparation (hoisted out of the per-call path)
# -----------------------------------------------------------------------------
class PreparedParams(NamedTuple):
    wp: jax.Array      # (Din_pad, E_pad)  matmul dtype
    gamma: jax.Array   # (3, E_pad)        f32
    beta: jax.Array    # (3, E_pad)        f32
    wh: jax.Array      # (3, E_pad, E_pad) matmul dtype
    bh: jax.Array      # (3, E_pad)        f32
    wf: jax.Array      # (E_pad, E_pad)    matmul dtype
    bf: jax.Array      # (1, E_pad)        f32
    d_in: int
    embed_dim: int


def prepare_params(params, *, matmul_dtype=jnp.float32) -> PreparedParams:
    """Done ONCE at load time: zero-pad Din and E to lane multiples and store
    matmul weights in `matmul_dtype`.  Padding rows/cols are exact zeros
    (gamma pads with 1) so real outputs are unchanged.  `bp` is intentionally
    dropped: it cancels exactly in the following training-mode BatchNorm."""
    d_in, E = params["wp"].shape
    din_pad = max(_round_up(d_in, LANE), LANE)
    e_pad = max(_round_up(E, LANE), LANE)
    pd, pe = din_pad - d_in, e_pad - E

    wp = jnp.pad(params["wp"], ((0, pd), (0, pe))).astype(matmul_dtype)
    wh = jnp.pad(params["wh"], ((0, 0), (0, pe), (0, pe))).astype(matmul_dtype)
    wf = jnp.pad(params["wf"], ((0, pe), (0, pe))).astype(matmul_dtype)
    gamma = jnp.pad(params["gamma"], ((0, 0), (0, pe)), constant_values=1.0)
    beta = jnp.pad(params["beta"], ((0, 0), (0, pe)))
    bh = jnp.pad(params["bh"], ((0, 0), (0, pe)))
    bf = jnp.pad(params["bf"], ((0, 0), (0, pe)))
    return PreparedParams(wp, gamma, beta, wh, bh, wf, bf, d_in, E)


# -----------------------------------------------------------------------------
# Per-call wrapper
# -----------------------------------------------------------------------------
def perspective_encoder(x, pp: PreparedParams, *, out_dtype=jnp.float32):
    """x: (B, patch_res*persp_dim) f32.  pp: output of prepare_params."""
    B, d_in = x.shape
    assert d_in == pp.d_in, "input feature dim mismatch"
    din_pad = pp.wp.shape[0]
    e_pad = pp.wf.shape[1]
    if din_pad != d_in:
        x = jnp.pad(x, ((0, 0), (0, din_pad - d_in)))  # ~1 KB; keeps lhs lane-dense

    w_itemsize = jnp.dtype(pp.wp.dtype).itemsize
    flops = 2 * B * (din_pad * e_pad + 4 * e_pad * e_pad)
    transcendentals = 3 * e_pad  # one rsqrt per feature per BN layer
    bytes_accessed = (4 * B * din_pad                                  # x
                      + jnp.dtype(out_dtype).itemsize * B * e_pad      # out
                      + w_itemsize * (din_pad * e_pad + 4 * e_pad * e_pad)  # W
                      + 4 * (3 * 2 * e_pad + 3 * e_pad + e_pad))       # BN + biases

    vmem = pl.BlockSpec(memory_space=pltpu.MemorySpace.VMEM)
    args = (x, pp.wp, pp.gamma, pp.beta, pp.wh, pp.bh, pp.wf, pp.bf)

    out = pl.pallas_call(
        _persp_encoder_kernel,
        out_shape=jax.ShapeDtypeStruct((B, e_pad), out_dtype),
        in_specs=[vmem] * len(args),
        out_specs=vmem,
        cost_estimate=pl.CostEstimate(flops=flops,
                                      transcendentals=transcendentals,
                                      bytes_accessed=bytes_accessed),
        # Trivially sufficient here; re-derive before scaling E (v7x: 64 MiB
        # physical VMEM vs 128 MiB on v5e/v6e).
        compiler_params=pltpu.CompilerParams(vmem_limit_bytes=32 << 20),
    )(*args)
    return out[:, :pp.embed_dim]


# -----------------------------------------------------------------------------
# Synthetic init + pure-JAX reference (mirrors the PyTorch module)
# -----------------------------------------------------------------------------
def init_params(key, patch_res, persp_dim, embed_dim):
    d_in = patch_res * persp_dim
    ks = jax.random.split(key, 10)
    scale = 0.05
    return {
        # proj: Linear(d_in, embed_dim); stored transposed (in, out)
        "wp": scale * jax.random.normal(ks[0], (d_in, embed_dim), jnp.float32),
        "bp": scale * jax.random.normal(ks[1], (1, embed_dim), jnp.float32),
        # 3 x BatchNorm1d(embed_dim) affine params
        "gamma": 1.0 + scale * jax.random.normal(ks[2], (3, embed_dim), jnp.float32),
        "beta": scale * jax.random.normal(ks[3], (3, embed_dim), jnp.float32),
        # 3 x Linear(embed_dim, embed_dim), stored transposed (in, out)
        "wh": scale * jax.random.normal(ks[4], (3, embed_dim, embed_dim), jnp.float32),
        "bh": scale * jax.random.normal(ks[5], (3, embed_dim), jnp.float32),
        # final Linear(embed_dim, embed_dim)
        "wf": scale * jax.random.normal(ks[6], (embed_dim, embed_dim), jnp.float32),
        "bf": scale * jax.random.normal(ks[7], (1, embed_dim), jnp.float32),
    }


def reference_forward(x, p):
    """Pure-JAX reference of the PyTorch forward (training-mode BN, incl. bp)."""
    y = x @ p["wp"] + p["bp"]
    for i in range(3):
        mean = jnp.mean(y, axis=0, keepdims=True)
        var = jnp.mean((y - mean) ** 2, axis=0, keepdims=True)
        y = (y - mean) / jnp.sqrt(var + BN_EPS) * p["gamma"][i] + p["beta"][i]
        y = jnp.maximum(y @ p["wh"][i] + p["bh"][i], 0.0)
    return y @ p["wf"] + p["bf"]


if __name__ == "__main__":
    # Small shapes consistent with the module:
    #   patch_res=16, persp_dim=2 -> input feature dim 32; embed_dim=32; batch=8
    patch_res, persp_dim, embed_dim, batch = 16, 2, 32, 8

    key = jax.random.PRNGKey(0)
    k_x, k_p = jax.random.split(key)
    x = jax.random.normal(k_x, (batch, patch_res * persp_dim), jnp.float32)
    params = init_params(k_p, patch_res, persp_dim, embed_dim)

    z_ref = reference_forward(x, params)

    # f32 weight path (exact-semantics check; bp omission only changes rounding
    # order, not the math).
    pp_f32 = prepare_params(params, matmul_dtype=jnp.float32)
    z = jax.block_until_ready(perspective_encoder(x, pp_f32))
    assert z.shape == (batch, embed_dim)
    assert jnp.allclose(z, z_ref, atol=1e-4, rtol=1e-4), "mismatch vs reference"

    # bf16 weight-storage path (halves weight DMA; BN/elementwise math stays f32).
    pp_bf16 = prepare_params(params, matmul_dtype=jnp.bfloat16)
    z16 = jax.block_until_ready(perspective_encoder(x, pp_bf16))
    assert z16.shape == (batch, embed_dim)
    assert jnp.allclose(z16, z_ref, atol=5e-2, rtol=5e-2), "bf16 path off"

    print("KERNEL_OK")
</pallas_src>

<mosaic_0001>
module attributes {stable_mosaic.version = 11 : i64} {
  func.func @_persp_encoder_kernel(%arg0: memref<8x128xf32, #tpu.memory_space<vmem>>, %arg1: memref<128x128xf32, #tpu.memory_space<vmem>>, %arg2: memref<3x128xf32, #tpu.memory_space<vmem>>, %arg3: memref<3x128xf32, #tpu.memory_space<vmem>>, %arg4: memref<3x128x128xf32, #tpu.memory_space<vmem>>, %arg5: memref<3x128xf32, #tpu.memory_space<vmem>>, %arg6: memref<128x128xf32, #tpu.memory_space<vmem>>, %arg7: memref<1x128xf32, #tpu.memory_space<vmem>>, %arg8: memref<8x128xf32, #tpu.memory_space<vmem>>) attributes {dimension_semantics = [], scalar_prefetch = 0 : i64, scratch_operands = 0 : i64, tpu.core_type = #tpu.core_type<tc>} {
    %c0 = arith.constant 0 : index
    %c0_0 = arith.constant 0 : index
    %0 = vector.load %arg0[%c0, %c0_0] : memref<8x128xf32, #tpu.memory_space<vmem>>, vector<8x128xf32>
    %c0_1 = arith.constant 0 : index
    %c0_2 = arith.constant 0 : index
    %1 = vector.load %arg1[%c0_1, %c0_2] : memref<128x128xf32, #tpu.memory_space<vmem>>, vector<128x128xf32>
    %cst = arith.constant dense<0.000000e+00> : vector<8x128xf32>
    %2 = tpu.matmul %0, %1, %cst {dimension_numbers = #tpu.dot_dimension_numbers<[1], [0], [0], [1], [0, 0, 1, 1], [], []>} : vector<8x128xf32>, vector<128x128xf32>, vector<8x128xf32> -> vector<8x128xf32>
    %cst_3 = arith.constant dense<0.000000e+00> : vector<128xf32>
    %3 = vector.multi_reduction <add>, %2, %cst_3 [0] : vector<8x128xf32> to vector<128xf32>
    %4 = vector.shape_cast %3 : vector<128xf32> to vector<1x128xf32>
    %cst_4 = arith.constant 8.000000e+00 : f32
    %5 = vector.broadcast %cst_4 : f32 to vector<1x128xf32>
    %6 = arith.divf %4, %5 : vector<1x128xf32>
    %7 = vector.broadcast %6 : vector<1x128xf32> to vector<8x128xf32>
    %8 = arith.subf %2, %7 : vector<8x128xf32>
    %9 = arith.mulf %8, %8 : vector<8x128xf32>
    %cst_5 = arith.constant dense<0.000000e+00> : vector<128xf32>
    %10 = vector.multi_reduction <add>, %9, %cst_5 [0] : vector<8x128xf32> to vector<128xf32>
    %11 = vector.shape_cast %10 : vector<128xf32> to vector<1x128xf32>
    %cst_6 = arith.constant 8.000000e+00 : f32
    %12 = vector.broadcast %cst_6 : f32 to vector<1x128xf32>
    %13 = arith.divf %11, %12 : vector<1x128xf32>
    %c0_7 = arith.constant 0 : index
    %c0_8 = arith.constant 0 : index
    %14 = vector.load %arg2[%c0_7, %c0_8] : memref<3x128xf32, #tpu.memory_space<vmem>>, vector<1x128xf32>
    %cst_9 = arith.constant 9.99999974E-6 : f32
    %15 = vector.broadcast %cst_9 : f32 to vector<1x128xf32>
    %16 = arith.addf %13, %15 : vector<1x128xf32>
    %17 = math.rsqrt %16 : vector<1x128xf32>
    %18 = arith.mulf %14, %17 : vector<1x128xf32>
    %19 = vector.broadcast %18 : vector<1x128xf32> to vector<8x128xf32>
    %20 = arith.mulf %8, %19 : vector<8x128xf32>
    %c0_10 = arith.constant 0 : index
    %c0_11 = arith.constant 0 : index
    %21 = vector.load %arg3[%c0_10, %c0_11] : memref<3x128xf32, #tpu.memory_space<vmem>>, vector<1x128xf32>
    %22 = vector.broadcast %21 : vector<1x128xf32> to vector<8x128xf32>
    %23 = arith.addf %20, %22 : vector<8x128xf32>
    %c0_12 = arith.constant 0 : index
    %c0_13 = arith.constant 0 : index
    %c0_14 = arith.constant 0 : index
    %24 = vector.load %arg4[%c0_12, %c0_13, %c0_14] : memref<3x128x128xf32, #tpu.memory_space<vmem>>, vector<1x128x128xf32>
    %25 = vector.shape_cast %24 : vector<1x128x128xf32> to vector<128x128xf32>
    %cst_15 = arith.constant dense<0.000000e+00> : vector<8x128xf32>
    %26 = tpu.matmul %23, %25, %cst_15 {dimension_numbers = #tpu.dot_dimension_numbers<[1], [0], [0], [1], [0, 0, 1, 1], [], []>} : vector<8x128xf32>, vector<128x128xf32>, vector<8x128xf32> -> vector<8x128xf32>
    %c0_16 = arith.constant 0 : index
    %c0_17 = arith.constant 0 : index
    %27 = vector.load %arg5[%c0_16, %c0_17] : memref<3x128xf32, #tpu.memory_space<vmem>>, vector<1x128xf32>
    %28 = vector.broadcast %27 : vector<1x128xf32> to vector<8x128xf32>
    %29 = arith.addf %26, %28 : vector<8x128xf32>
    %cst_18 = arith.constant 0.000000e+00 : f32
    %30 = vector.broadcast %cst_18 : f32 to vector<8x128xf32>
    %31 = arith.maximumf %29, %30 : vector<8x128xf32>
    %cst_19 = arith.constant dense<0.000000e+00> : vector<128xf32>
    %32 = vector.multi_reduction <add>, %31, %cst_19 [0] : vector<8x128xf32> to vector<128xf32>
    %33 = vector.shape_cast %32 : vector<128xf32> to vector<1x128xf32>
    %cst_20 = arith.constant 8.000000e+00 : f32
    %34 = vector.broadcast %cst_20 : f32 to vector<1x128xf32>
    %35 = arith.divf %33, %34 : vector<1x128xf32>
    %36 = vector.broadcast %35 : vector<1x128xf32> to vector<8x128xf32>
    %37 = arith.subf %31, %36 : vector<8x128xf32>
    %38 = arith.mulf %37, %37 : vector<8x128xf32>
    %cst_21 = arith.constant dense<0.000000e+00> : vector<128xf32>
    %39 = vector.multi_reduction <add>, %38, %cst_21 [0] : vector<8x128xf32> to vector<128xf32>
    %40 = vector.shape_cast %39 : vector<128xf32> to vector<1x128xf32>
    %cst_22 = arith.constant 8.000000e+00 : f32
    %41 = vector.broadcast %cst_22 : f32 to vector<1x128xf32>
    %42 = arith.divf %40, %41 : vector<1x128xf32>
    %c1 = arith.constant 1 : index
    %c0_23 = arith.constant 0 : index
    %43 = vector.load %arg2[%c1, %c0_23] : memref<3x128xf32, #tpu.memory_space<vmem>>, vector<1x128xf32>
    %cst_24 = arith.constant 9.99999974E-6 : f32
    %44 = vector.broadcast %cst_24 : f32 to vector<1x128xf32>
    %45 = arith.addf %42, %44 : vector<1x128xf32>
    %46 = math.rsqrt %45 : vector<1x128xf32>
    %47 = arith.mulf %43, %46 : vector<1x128xf32>
    %48 = vector.broadcast %47 : vector<1x128xf32> to vector<8x128xf32>
    %49 = arith.mulf %37, %48 : vector<8x128xf32>
    %c1_25 = arith.constant 1 : index
    %c0_26 = arith.constant 0 : index
    %50 = vector.load %arg3[%c1_25, %c0_26] : memref<3x128xf32, #tpu.memory_space<vmem>>, vector<1x128xf32>
    %51 = vector.broadcast %50 : vector<1x128xf32> to vector<8x128xf32>
    %52 = arith.addf %49, %51 : vector<8x128xf32>
    %c1_27 = arith.constant 1 : index
    %c0_28 = arith.constant 0 : index
    %c0_29 = arith.constant 0 : index
    %53 = vector.load %arg4[%c1_27, %c0_28, %c0_29] : memref<3x128x128xf32, #tpu.memory_space<vmem>>, vector<1x128x128xf32>
    %54 = vector.shape_cast %53 : vector<1x128x128xf32> to vector<128x128xf32>
    %cst_30 = arith.constant dense<0.000000e+00> : vector<8x128xf32>
    %55 = tpu.matmul %52, %54, %cst_30 {dimension_numbers = #tpu.dot_dimension_numbers<[1], [0], [0], [1], [0, 0, 1, 1], [], []>} : vector<8x128xf32>, vector<128x128xf32>, vector<8x128xf32> -> vector<8x128xf32>
    %c1_31 = arith.constant 1 : index
    %c0_32 = arith.constant 0 : index
    %56 = vector.load %arg5[%c1_31, %c0_32] : memref<3x128xf32, #tpu.memory_space<vmem>>, vector<1x128xf32>
    %57 = vector.broadcast %56 : vector<1x128xf32> to vector<8x128xf32>
    %58 = arith.addf %55, %57 : vector<8x128xf32>
    %cst_33 = arith.constant 0.000000e+00 : f32
    %59 = vector.broadcast %cst_33 : f32 to vector<8x128xf32>
    %60 = arith.maximumf %58, %59 : vector<8x128xf32>
    %cst_34 = arith.constant dense<0.000000e+00> : vector<128xf32>
    %61 = vector.multi_reduction <add>, %60, %cst_34 [0] : vector<8x128xf32> to vector<128xf32>
    %62 = vector.shape_cast %61 : vector<128xf32> to vector<1x128xf32>
    %cst_35 = arith.constant 8.000000e+00 : f32
    %63 = vector.broadcast %cst_35 : f32 to vector<1x128xf32>
    %64 = arith.divf %62, %63 : vector<1x128xf32>
    %65 = vector.broadcast %64 : vector<1x128xf32> to vector<8x128xf32>
    %66 = arith.subf %60, %65 : vector<8x128xf32>
    %67 = arith.mulf %66, %66 : vector<8x128xf32>
    %cst_36 = arith.constant dense<0.000000e+00> : vector<128xf32>
    %68 = vector.multi_reduction <add>, %67, %cst_36 [0] : vector<8x128xf32> to vector<128xf32>
    %69 = vector.shape_cast %68 : vector<128xf32> to vector<1x128xf32>
    %cst_37 = arith.constant 8.000000e+00 : f32
    %70 = vector.broadcast %cst_37 : f32 to vector<1x128xf32>
    %71 = arith.divf %69, %70 : vector<1x128xf32>
    %c2 = arith.constant 2 : index
    %c0_38 = arith.constant 0 : index
    %72 = vector.load %arg2[%c2, %c0_38] : memref<3x128xf32, #tpu.memory_space<vmem>>, vector<1x128xf32>
    %cst_39 = arith.constant 9.99999974E-6 : f32
    %73 = vector.broadcast %cst_39 : f32 to vector<1x128xf32>
    %74 = arith.addf %71, %73 : vector<1x128xf32>
    %75 = math.rsqrt %74 : vector<1x128xf32>
    %76 = arith.mulf %72, %75 : vector<1x128xf32>
    %77 = vector.broadcast %76 : vector<1x128xf32> to vector<8x128xf32>
    %78 = arith.mulf %66, %77 : vector<8x128xf32>
    %c2_40 = arith.constant 2 : index
    %c0_41 = arith.constant 0 : index
    %79 = vector.load %arg3[%c2_40, %c0_41] : memref<3x128xf32, #tpu.memory_space<vmem>>, vector<1x128xf32>
    %80 = vector.broadcast %79 : vector<1x128xf32> to vector<8x128xf32>
    %81 = arith.addf %78, %80 : vector<8x128xf32>
    %c2_42 = arith.constant 2 : index
    %c0_43 = arith.constant 0 : index
    %c0_44 = arith.constant 0 : index
    %82 = vector.load %arg4[%c2_42, %c0_43, %c0_44] : memref<3x128x128xf32, #tpu.memory_space<vmem>>, vector<1x128x128xf32>
    %83 = vector.shape_cast %82 : vector<1x128x128xf32> to vector<128x128xf32>
    %cst_45 = arith.constant dense<0.000000e+00> : vector<8x128xf32>
    %84 = tpu.matmul %81, %83, %cst_45 {dimension_numbers = #tpu.dot_dimension_numbers<[1], [0], [0], [1], [0, 0, 1, 1], [], []>} : vector<8x128xf32>, vector<128x128xf32>, vector<8x128xf32> -> vector<8x128xf32>
    %c2_46 = arith.constant 2 : index
    %c0_47 = arith.constant 0 : index
    %85 = vector.load %arg5[%c2_46, %c0_47] : memref<3x128xf32, #tpu.memory_space<vmem>>, vector<1x128xf32>
    %86 = vector.broadcast %85 : vector<1x128xf32> to vector<8x128xf32>
    %87 = arith.addf %84, %86 : vector<8x128xf32>
    %cst_48 = arith.constant 0.000000e+00 : f32
    %88 = vector.broadcast %cst_48 : f32 to vector<8x128xf32>
    %89 = arith.maximumf %87, %88 : vector<8x128xf32>
    %c0_49 = arith.constant 0 : index
    %c0_50 = arith.constant 0 : index
    %90 = vector.load %arg6[%c0_49, %c0_50] : memref<128x128xf32, #tpu.memory_space<vmem>>, vector<128x128xf32>
    %cst_51 = arith.constant dense<0.000000e+00> : vector<8x128xf32>
    %91 = tpu.matmul %89, %90, %cst_51 {dimension_numbers = #tpu.dot_dimension_numbers<[1], [0], [0], [1], [0, 0, 1, 1], [], []>} : vector<8x128xf32>, vector<128x128xf32>, vector<8x128xf32> -> vector<8x128xf32>
    %c0_52 = arith.constant 0 : index
    %c0_53 = arith.constant 0 : index
    %92 = vector.load %arg7[%c0_52, %c0_53] : memref<1x128xf32, #tpu.memory_space<vmem>>, vector<1x128xf32>
    %93 = vector.broadcast %92 : vector<1x128xf32> to vector<8x128xf32>
    %94 = arith.addf %91, %93 : vector<8x128xf32>
    %c0_54 = arith.constant 0 : index
    %c0_55 = arith.constant 0 : index
    %95 = vector.load %arg8[%c0_54, %c0_55] : memref<8x128xf32, #tpu.memory_space<vmem>>, vector<8x128xf32>
    tpu.vector_store %arg8[%c0_54, %c0_55], %94 {strides = array<i32>} : memref<8x128xf32, #tpu.memory_space<vmem>>, vector<8x128xf32>,
    return
  }
}

</mosaic_0001>

<llo_original>
// kernel: tpu_custom_call.1
$region0: #{tpu_custom_call.1}
  #allocation0 [shape = 'u32[]', space=smem, size = 0x4, offset = 0x4, fixed_abs, tag = 'smem constant byte address 0x4 - core index']
  #allocation1 [shape = 'u32[144,128]{1,0:T(1,128)}', space=vmem, size = 0x12000, scoped, tag = 'internal scratch']
  %s0 = inlined_call_operand.hbm [shape: f32[8,128], index: 0, kind: input, shape index: {}]
  %s1 = inlined_call_operand.hbm [shape: f32[128,128], index: 1, kind: input, shape index: {}]
  %s2 = inlined_call_operand.hbm [shape: f32[3,128], index: 2, kind: input, shape index: {}]
  %s3 = inlined_call_operand.vmem [shape: f32[3,128], index: 3, kind: input, shape index: {}]
  %s4 = inlined_call_operand.hbm [shape: f32[3,128,128], index: 4, kind: input, shape index: {}]
  %s5 = inlined_call_operand.vmem [shape: f32[3,128], index: 5, kind: input, shape index: {}]
  %s6 = inlined_call_operand.hbm [shape: f32[128,128], index: 6, kind: input, shape index: {}]
  %s7 = inlined_call_operand.vmem [shape: f32[1,128], index: 7, kind: input, shape index: {}]
  %s8 = inlined_call_operand.hbm [shape: f32[8,128], index: 8, kind: output, shape index: {}]
  %s9 = sld [smem:[#allocation0]]
  $region62: #{tpu_custom_call.1} parent=0
    _
  %s11 = ssub.s32 1, %s9
  %s12 = scalar_select 0, %s11, %s9
  $region1: #{tpu_custom_call.1} parent=0
    #allocation2 [shape = 'u8[4096]{0}', space=vmem, size = 0x1000, scoped, tag = 'input window, operand 0, single buffered']
    #allocation3 [shape = 's32[1]{0}', space=sflag, size = 0x4, scoped, tag = 'scoped memory for tpu_custom_call.1']
    #allocation4 [shape = 's32[1]{0}', space=sflag, size = 0x4, scoped, tag = 'scoped memory for tpu_custom_call.1']
    #allocation5 [shape = 'u8[65536]{0}', space=vmem, size = 0x10000, scoped, tag = 'input window, operand 1, single buffered']
    #allocation6 [shape = 's32[1]{0}', space=sflag, size = 0x4, scoped, tag = 'scoped memory for tpu_custom_call.1']
    #allocation7 [shape = 'u8[2048]{0}', space=vmem, size = 0x800, scoped, tag = 'input window, operand 2, single buffered']
    #allocation8 [shape = 'u8[196608]{0}', space=vmem, size = 0x30000, scoped, tag = 'input window, operand 4, single buffered']
    #allocation9 [shape = 's32[1]{0}', space=sflag, size = 0x4, scoped, tag = 'scoped memory for tpu_custom_call.1']
    #allocation10 [shape = 'u8[65536]{0}', space=vmem, size = 0x10000, scoped, tag = 'input window, operand 6, single buffered']
    #allocation11 [shape = 'u8[4096]{0}', space=vmem, size = 0x1000, scoped, tag = 'output window, operand 0, single buffered']
    %13 = vsyncpa [#allocation3], 0
    %14 = vsyncpa [#allocation6], 0
    %15 = vsyncpa [#allocation9], 0
    %16 = vsyncpa [#allocation4], 0
    // Predicated region
    $region2: #{tpu_custom_call.1} parent=1 // pred_check
      _
    $region3: #{tpu_custom_call.1} parent=1 // pred_check_branch
      %18 = sbr.rel (0) target = $region5
    $region4: #{tpu_custom_call.1} parent=1 // pred_region
      %s20 = ssub.s32 128, 128
      %21 = vsyncadd [#allocation3], %s20
      %s23 = sshll.u32 [#allocation2], 4
      %s24 = int_to_ptr.vmem [resolvable:$true] %s23
      %26 = dma.hbm_to_vmem [thread:$0]  %s0, 128, %s24, [#allocation3]
    $region5: #{tpu_custom_call.1} parent=1 // pred_fallthru
      _
    // Predicated region
    $region6: #{tpu_custom_call.1} parent=1 // pred_check
      _
    $region7: #{tpu_custom_call.1} parent=1 // pred_check_branch
      %28 = sbr.rel (0) target = $region9
    $region8: #{tpu_custom_call.1} parent=1 // pred_region
      %s30 = ssub.s32 2048, 2048
      %31 = vsyncadd [#allocation6], %s30
      %s32 = sshll.u32 [#allocation5], 4
      %s33 = int_to_ptr.vmem [resolvable:$true] %s32
      %38 = dma.hbm_to_vmem [thread:$0]  %s1, 2048, %s33, [#allocation6], 128, 128, 8
    $region9: #{tpu_custom_call.1} parent=1 // pred_fallthru
      _
    // Predicated region
    $region10: #{tpu_custom_call.1} parent=1 // pred_check
      _
    $region11: #{tpu_custom_call.1} parent=1 // pred_check_branch
      %40 = sbr.rel (0) target = $region13
    $region12: #{tpu_custom_call.1} parent=1 // pred_region
      %s42 = ssub.s32 64, 64
      %43 = vsyncadd [#allocation6], %s42
      %s45 = sshll.u32 [#allocation7], 4
      %s46 = int_to_ptr.vmem [resolvable:$true] %s45
      %48 = dma.hbm_to_vmem [thread:$0]  %s2, 64, %s46, [#allocation6]
    $region13: #{tpu_custom_call.1} parent=1 // pred_fallthru
      _
    // Predicated region
    $region14: #{tpu_custom_call.1} parent=1 // pred_check
      _
    $region15: #{tpu_custom_call.1} parent=1 // pred_check_branch
      %50 = sbr.rel (0) target = $region17
    $region16: #{tpu_custom_call.1} parent=1 // pred_region
      _
    $region17: #{tpu_custom_call.1} parent=1 // pred_fallthru
      _
    // Predicated region
    $region18: #{tpu_custom_call.1} parent=1 // pred_check
      _
    $region19: #{tpu_custom_call.1} parent=1 // pred_check_branch
      %52 = sbr.rel (0) target = $region21
    $region20: #{tpu_custom_call.1} parent=1 // pred_region
      %s54 = ssub.s32 6144, 6144
      %55 = vsyncadd [#allocation9], %s54
      %s56 = sshll.u32 [#allocation8], 4
      %s57 = int_to_ptr.vmem [resolvable:$true] %s56
      %62 = dma.hbm_to_vmem [thread:$0]  %s4, 6144, %s57, [#allocation9], 128, 128, 8
    $region21: #{tpu_custom_call.1} parent=1 // pred_fallthru
      _
    // Predicated region
    $region22: #{tpu_custom_call.1} parent=1 // pred_check
      _
    $region23: #{tpu_custom_call.1} parent=1 // pred_check_branch
      %64 = sbr.rel (0) target = $region25
    $region24: #{tpu_custom_call.1} parent=1 // pred_region
      _
    $region25: #{tpu_custom_call.1} parent=1 // pred_fallthru
      _
    // Predicated region
    $region26: #{tpu_custom_call.1} parent=1 // pred_check
      _
    $region27: #{tpu_custom_call.1} parent=1 // pred_check_branch
      %66 = sbr.rel (0) target = $region29
    $region28: #{tpu_custom_call.1} parent=1 // pred_region
      %s68 = ssub.s32 2048, 2048
      %69 = vsyncadd [#allocation9], %s68
      %s70 = sshll.u32 [#allocation10], 4
      %s71 = int_to_ptr.vmem [resolvable:$true] %s70
      %76 = dma.hbm_to_vmem [thread:$0]  %s6, 2048, %s71, [#allocation9], 128, 128, 8
    $region29: #{tpu_custom_call.1} parent=1 // pred_fallthru
      _
    // Predicated region
    $region30: #{tpu_custom_call.1} parent=1 // pred_check
      _
    $region31: #{tpu_custom_call.1} parent=1 // pred_check_branch
      %78 = sbr.rel (0) target = $region33
    $region32: #{tpu_custom_call.1} parent=1 // pred_region
      _
    $region33: #{tpu_custom_call.1} parent=1 // pred_fallthru
      _
    // Predicated region
    $region34: #{tpu_custom_call.1} parent=1 // pred_check
      _
    $region35: #{tpu_custom_call.1} parent=1 // pred_check_branch
      %80 = sbr.rel (0) target = $region37
    $region36: #{tpu_custom_call.1} parent=1 // pred_region
      %81 = dma.done [#allocation3], 128
    $region37: #{tpu_custom_call.1} parent=1 // pred_fallthru
      _
    // Predicated region
    $region38: #{tpu_custom_call.1} parent=1 // pred_check
      _
    $region39: #{tpu_custom_call.1} parent=1 // pred_check_branch
      %83 = sbr.rel (0) target = $region41
    $region40: #{tpu_custom_call.1} parent=1 // pred_region
      %84 = dma.done [#allocation6], 2048
    $region41: #{tpu_custom_call.1} parent=1 // pred_fallthru
      _
    // Predicated region
    $region42: #{tpu_custom_call.1} parent=1 // pred_check
      _
    $region43: #{tpu_custom_call.1} parent=1 // pred_check_branch
      %86 = sbr.rel (0) target = $region45
    $region44: #{tpu_custom_call.1} parent=1 // pred_region
      %87 = dma.done [#allocation6], 64
    $region45: #{tpu_custom_call.1} parent=1 // pred_fallthru
      _
    // Predicated region
    $region46: #{tpu_custom_call.1} parent=1 // pred_check
      _
    $region47: #{tpu_custom_call.1} parent=1 // pred_check_branch
      %89 = sbr.rel (0) target = $region49
    $region48: #{tpu_custom_call.1} parent=1 // pred_region
      %90 = dma.done [#allocation9], 6144
    $region49: #{tpu_custom_call.1} parent=1 // pred_fallthru
      _
    // Predicated region
    $region50: #{tpu_custom_call.1} parent=1 // pred_check
      _
    $region51: #{tpu_custom_call.1} parent=1 // pred_check_branch
      %92 = sbr.rel (0) target = $region53
    $region52: #{tpu_custom_call.1} parent=1 // pred_region
      %93 = dma.done [#allocation9], 2048
    $region53: #{tpu_custom_call.1} parent=1 // pred_fallthru
      _
    %v94 = vld [vmem:[#allocation2] sm:$0xff]
    %v95 = vld [vmem:[#allocation5] sm:$0xff]
    %v96 = vld [vmem:[#allocation5 + $0x8] sm:$0xff]
    %v97 = vld [vmem:[#allocation5 + $0x10] sm:$0xff]
    %v98 = vld [vmem:[#allocation5 + $0x18] sm:$0xff]
    %v99 = vld [vmem:[#allocation5 + $0x20] sm:$0xff]
    %v100 = vld [vmem:[#allocation5 + $0x28] sm:$0xff]
    %v101 = vld [vmem:[#allocation5 + $0x30] sm:$0xff]
    %v102 = vld [vmem:[#allocation5 + $0x38] sm:$0xff]
    %v103 = vld [vmem:[#allocation5 + $0x40] sm:$0xff]
    %v104 = vld [vmem:[#allocation5 + $0x48] sm:$0xff]
    %v105 = vld [vmem:[#allocation5 + $0x50] sm:$0xff]
    %v106 = vld [vmem:[#allocation5 + $0x58] sm:$0xff]
    %v107 = vld [vmem:[#allocation5 + $0x60] sm:$0xff]
    %v108 = vld [vmem:[#allocation5 + $0x68] sm:$0xff]
    %v109 = vld [vmem:[#allocation5 + $0x70] sm:$0xff]
    %v110 = vld [vmem:[#allocation5 + $0x78] sm:$0xff]
    %111 = vmatprep.subr.mxu0 0.0
    %112 = vmatpush1.msra.mxu0 %v110
    %113 = vmatprep.subr.mxu0 0.0
    %114 = vmatpush1.msra.mxu0 %v109
    %115 = vmatprep.subr.mxu0 0.0
    %116 = vmatpush1.msra.mxu0 %v108
    %117 = vmatprep.subr.mxu0 0.0
    %118 = vmatpush1.msra.mxu0 %v107
    %119 = vmatprep.subr.mxu0 0.0
    %120 = vmatpush1.msra.mxu0 %v106
    %121 = vmatprep.subr.mxu0 0.0
    %122 = vmatpush1.msra.mxu0 %v105
    %123 = vmatprep.subr.mxu0 0.0
    %124 = vmatpush1.msra.mxu0 %v104
    %125 = vmatprep.subr.mxu0 0.0
    %126 = vmatpush1.msra.mxu0 %v103
    %127 = vmatprep.subr.mxu0 0.0
    %128 = vmatpush1.msra.mxu0 %v102
    %129 = vmatprep.subr.mxu0 0.0
    %130 = vmatpush1.msra.mxu0 %v101
    %131 = vmatprep.subr.mxu0 0.0
    %132 = vmatpush1.msra.mxu0 %v100
    %133 = vmatprep.subr.mxu0 0.0
    %134 = vmatpush1.msra.mxu0 %v99
    %135 = vmatprep.subr.mxu0 0.0
    %136 = vmatpush1.msra.mxu0 %v98
    %137 = vmatprep.subr.mxu0 0.0
    %138 = vmatpush1.msra.mxu0 %v97
    %139 = vmatprep.subr.mxu0 0.0
    %140 = vmatpush1.msra.mxu0 %v96
    %141 = vmatprep.subr.mxu0 0.0
    %142 = vmatpush1.msra.mxu0 %v95
    %143 = vmatprep.subr.mxu0 0.0
    %144 = vmatpush2.msra.mxu0 0.0
    %145 = vmatprep.subr.mxu0 0.0
    %146 = vmatpush2.msra.mxu0 0.0
    %147 = vmatprep.subr.mxu0 0.0
    %148 = vmatpush2.msra.mxu0 0.0
    %149 = vmatprep.subr.mxu0 0.0
    %150 = vmatpush2.msra.mxu0 0.0
    %151 = vmatprep.subr.mxu0 0.0
    %152 = vmatpush2.msra.mxu0 0.0
    %153 = vmatprep.subr.mxu0 0.0
    %154 = vmatpush2.msra.mxu0 0.0
    %155 = vmatprep.subr.mxu0 0.0
    %156 = vmatpush2.msra.mxu0 0.0
    %157 = vmatprep.subr.mxu0 0.0
    %158 = vmatpush2.msra.mxu0 0.0
    %159 = vmatprep.subr.mxu0 0.0
    %160 = vmatpush2.msra.mxu0 0.0
    %161 = vmatprep.subr.mxu0 0.0
    %162 = vmatpush2.msra.mxu0 0.0
    %163 = vmatprep.subr.mxu0 0.0
    %164 = vmatpush2.msra.mxu0 0.0
    %165 = vmatprep.subr.mxu0 0.0
    %166 = vmatpush2.msra.mxu0 0.0
    %167 = vmatprep.subr.mxu0 0.0
    %168 = vmatpush2.msra.mxu0 0.0
    %169 = vmatprep.subr.mxu0 0.0
    %170 = vmatpush2.msra.mxu0 0.0
    %171 = vmatprep.subr.mxu0 0.0
    %172 = vmatpush2.msra.mxu0 0.0
    %173 = vmatprep.subr.mxu0 0.0
    %174 = vmatpush2.msra.mxu0 0.0
    %175 = vmatprep.mubr.f32.mxu0 0.0
    %176 = vmatmul.mubr.f32.gmra.mxu0 %v94
    %v177 = vpop.f32.mrf.mxu0
    %v178 = vadd.f32 0.0, %v177
    %v179 = vpop.f32.mrf.mxu0
    %180 = vdwg.mxu0
    %v181 = vrot.slane %v178, 4
    %v182 = vadd.f32 %v178, %v181
    %v183 = vrot.slane %v182, 2
    %v184 = vadd.f32 %v182, %v183
    %v185 = vrot.slane %v184, 1
    %v186 = vadd.f32 %v184, %v185
    %v187 = vrcp.pop 8.0
    %v188 = vmul.f32 %v186, %v187
    %v189 = vsub.f32 %v178, %v188
    %v190 = vmul.f32 %v189, %v189
    %v191 = vrot.slane %v190, 4
    %v192 = vadd.f32 %v190, %v191
    %v193 = vrot.slane %v192, 2
    %v194 = vadd.f32 %v192, %v193
    %v195 = vrot.slane %v194, 1
    %v196 = vadd.f32 %v194, %v195
    %v197 = vmul.f32 %v196, %v187
    %v198 = vld [vmem:[#allocation7] sm:$0x1]
    %v199 = vadd.f32 %v197, 1e-05
    %v200 = vrsqrt.pop %v199
    %v201 = vmul.f32 %v198, %v200
    %v202 = vlaneseq
    %v203 = vshrl.u32 %v202, 7
    %v204 = vsub.s32 0, %v203
    %v205 = vrot.slane %v201, %v204
    %v206 = vmul.f32 %v189, %v205
    %v207 = vld [vmem:[%s3] sm:$0x1]
    %v208 = vlaneseq
    %v209 = vshrl.u32 %v208, 7
    %v210 = vsub.s32 0, %v209
    %v211 = vrot.slane %v207, %v210
    %v212 = vadd.f32 %v206, %v211
    %v213 = vld [vmem:[#allocation8] sm:$0xff]
    %v214 = vld [vmem:[#allocation8 + $0x8] sm:$0xff]
    %v215 = vld [vmem:[#allocation8 + $0x10] sm:$0xff]
    %v216 = vld [vmem:[#allocation8 + $0x18] sm:$0xff]
    %v217 = vld [vmem:[#allocation8 + $0x20] sm:$0xff]
    %v218 = vld [vmem:[#allocation8 + $0x28] sm:$0xff]
    %v219 = vld [vmem:[#allocation8 + $0x30] sm:$0xff]
    %v220 = vld [vmem:[#allocation8 + $0x38] sm:$0xff]
    %v221 = vld [vmem:[#allocation8 + $0x40] sm:$0xff]
    %v222 = vld [vmem:[#allocation8 + $0x48] sm:$0xff]
    %v223 = vld [vmem:[#allocation8 + $0x50] sm:$0xff]
    %v224 = vld [vmem:[#allocation8 + $0x58] sm:$0xff]
    %v225 = vld [vmem:[#allocation8 + $0x60] sm:$0xff]
    %v226 = vld [vmem:[#allocation8 + $0x68] sm:$0xff]
    %v227 = vld [vmem:[#allocation8 + $0x70] sm:$0xff]
    %v228 = vld [vmem:[#allocation8 + $0x78] sm:$0xff]
    %v229 = vld [vmem:[%s5] sm:$0x1]
    %v230 = vlaneseq
    %v231 = vshrl.u32 %v230, 7
    %v232 = vsub.s32 0, %v231
    %v233 = vrot.slane %v229, %v232
    %234 = vmatprep.subr.mxu0 0.0
    %235 = vmatpush1.msra.mxu0 %v228
    %236 = vmatprep.subr.mxu0 0.0
    %237 = vmatpush1.msra.mxu0 %v227
    %238 = vmatprep.subr.mxu0 0.0
    %239 = vmatpush1.msra.mxu0 %v226
    %240 = vmatprep.subr.mxu0 0.0
    %241 = vmatpush1.msra.mxu0 %v225
    %242 = vmatprep.subr.mxu0 0.0
    %243 = vmatpush1.msra.mxu0 %v224
    %244 = vmatprep.subr.mxu0 0.0
    %245 = vmatpush1.msra.mxu0 %v223
    %246 = vmatprep.subr.mxu0 0.0
    %247 = vmatpush1.msra.mxu0 %v222
    %248 = vmatprep.subr.mxu0 0.0
    %249 = vmatpush1.msra.mxu0 %v221
    %250 = vmatprep.subr.mxu0 0.0
    %251 = vmatpush1.msra.mxu0 %v220
    %252 = vmatprep.subr.mxu0 0.0
    %253 = vmatpush1.msra.mxu0 %v219
    %254 = vmatprep.subr.mxu0 0.0
    %255 = vmatpush1.msra.mxu0 %v218
    %256 = vmatprep.subr.mxu0 0.0
    %257 = vmatpush1.msra.mxu0 %v217
    %258 = vmatprep.subr.mxu0 0.0
    %259 = vmatpush1.msra.mxu0 %v216
    %260 = vmatprep.subr.mxu0 0.0
    %261 = vmatpush1.msra.mxu0 %v215
    %262 = vmatprep.subr.mxu0 0.0
    %263 = vmatpush1.msra.mxu0 %v214
    %264 = vmatprep.subr.mxu0 0.0
    %265 = vmatpush1.msra.mxu0 %v213
    %266 = vmatprep.subr.mxu0 0.0
    %267 = vmatpush2.msra.mxu0 0.0
    %268 = vmatprep.subr.mxu0 0.0
    %269 = vmatpush2.msra.mxu0 0.0
    %270 = vmatprep.subr.mxu0 0.0
    %271 = vmatpush2.msra.mxu0 0.0
    %272 = vmatprep.subr.mxu0 0.0
    %273 = vmatpush2.msra.mxu0 0.0
    %274 = vmatprep.subr.mxu0 0.0
    %275 = vmatpush2.msra.mxu0 0.0
    %276 = vmatprep.subr.mxu0 0.0
    %277 = vmatpush2.msra.mxu0 0.0
    %278 = vmatprep.subr.mxu0 0.0
    %279 = vmatpush2.msra.mxu0 0.0
    %280 = vmatprep.subr.mxu0 0.0
    %281 = vmatpush2.msra.mxu0 0.0
    %282 = vmatprep.subr.mxu0 0.0
    %283 = vmatpush2.msra.mxu0 0.0
    %284 = vmatprep.subr.mxu0 0.0
    %285 = vmatpush2.msra.mxu0 0.0
    %286 = vmatprep.subr.mxu0 0.0
    %287 = vmatpush2.msra.mxu0 0.0
    %288 = vmatprep.subr.mxu0 0.0
    %289 = vmatpush2.msra.mxu0 0.0
    %290 = vmatprep.subr.mxu0 0.0
    %291 = vmatpush2.msra.mxu0 0.0
    %292 = vmatprep.subr.mxu0 0.0
    %293 = vmatpush2.msra.mxu0 0.0
    %294 = vmatprep.subr.mxu0 0.0
    %295 = vmatpush2.msra.mxu0 0.0
    %296 = vmatprep.subr.mxu0 0.0
    %297 = vmatpush2.msra.mxu0 0.0
    %298 = vmatprep.mubr.f32.mxu0 0.0
    %299 = vmatmul.mubr.f32.gmra.mxu0 %v212
    %v300 = vpop.f32.mrf.mxu0
    %v301 = vadd.f32 %v233, %v300
    %v302 = vpop.f32.mrf.mxu0
    %303 = vdwg.mxu0
    %v304 = vmax.f32 %v301, 0.0
    %v305 = vrot.slane %v304, 4
    %v306 = vadd.f32 %v304, %v305
    %v307 = vrot.slane %v306, 2
    %v308 = vadd.f32 %v306, %v307
    %v309 = vrot.slane %v308, 1
    %v310 = vadd.f32 %v308, %v309
    %v311 = vmul.f32 %v310, %v187
    %v312 = vsub.f32 %v304, %v311
    %v313 = vmul.f32 %v312, %v312
    %v314 = vrot.slane %v313, 4
    %v315 = vadd.f32 %v313, %v314
    %v316 = vrot.slane %v315, 2
    %v317 = vadd.f32 %v315, %v316
    %v318 = vrot.slane %v317, 1
    %v319 = vadd.f32 %v317, %v318
    %v320 = vmul.f32 %v319, %v187
    %v321 = vld [vmem:[#allocation7 + $0x1] sm:$0x1]
    %v322 = vadd.f32 %v320, 1e-05
    %v323 = vrsqrt.pop %v322
    %v324 = vmul.f32 %v321, %v323
    %v325 = vlaneseq
    %v326 = vshrl.u32 %v325, 7
    %v327 = vsub.s32 0, %v326
    %v328 = vrot.slane %v324, %v327
    %v329 = vmul.f32 %v312, %v328
    %v330 = vld [vmem:[%s3 + $0x1] sm:$0x1]
    %v331 = vlaneseq
    %v332 = vshrl.u32 %v331, 7
    %v333 = vsub.s32 0, %v332
    %v334 = vrot.slane %v330, %v333
    %v335 = vadd.f32 %v329, %v334
    %s336 = scalar_lea.vmem [#allocation8], 128
    %v337 = vld [vmem:[%s336] sm:$0xff]
    %v338 = vld [vmem:[%s336 + $0x8] sm:$0xff]
    %v339 = vld [vmem:[%s336 + $0x10] sm:$0xff]
    %v340 = vld [vmem:[%s336 + $0x18] sm:$0xff]
    %v341 = vld [vmem:[%s336 + $0x20] sm:$0xff]
    %v342 = vld [vmem:[%s336 + $0x28] sm:$0xff]
    %v343 = vld [vmem:[%s336 + $0x30] sm:$0xff]
    %v344 = vld [vmem:[%s336 + $0x38] sm:$0xff]
    %v345 = vld [vmem:[%s336 + $0x40] sm:$0xff]
    %v346 = vld [vmem:[%s336 + $0x48] sm:$0xff]
    %v347 = vld [vmem:[%s336 + $0x50] sm:$0xff]
    %v348 = vld [vmem:[%s336 + $0x58] sm:$0xff]
    %v349 = vld [vmem:[%s336 + $0x60] sm:$0xff]
    %v350 = vld [vmem:[%s336 + $0x68] sm:$0xff]
    %v351 = vld [vmem:[%s336 + $0x70] sm:$0xff]
    %v352 = vld [vmem:[%s336 + $0x78] sm:$0xff]
    %v353 = vld [vmem:[%s5 + $0x1] sm:$0x1]
    %v354 = vlaneseq
    %v355 = vshrl.u32 %v354, 7
    %v356 = vsub.s32 0, %v355
    %v357 = vrot.slane %v353, %v356
    %358 = vmatprep.subr.mxu0 0.0
    %359 = vmatpush1.msra.mxu0 %v352
    %360 = vmatprep.subr.mxu0 0.0
    %361 = vmatpush1.msra.mxu0 %v351
    %362 = vmatprep.subr.mxu0 0.0
    %363 = vmatpush1.msra.mxu0 %v350
    %364 = vmatprep.subr.mxu0 0.0
    %365 = vmatpush1.msra.mxu0 %v349
    %366 = vmatprep.subr.mxu0 0.0
    %367 = vmatpush1.msra.mxu0 %v348
    %368 = vmatprep.subr.mxu0 0.0
    %369 = vmatpush1.msra.mxu0 %v347
    %370 = vmatprep.subr.mxu0 0.0
    %371 = vmatpush1.msra.mxu0 %v346
    %372 = vmatprep.subr.mxu0 0.0
    %373 = vmatpush1.msra.mxu0 %v345
    %374 = vmatprep.subr.mxu0 0.0
    %375 = vmatpush1.msra.mxu0 %v344
    %376 = vmatprep.subr.mxu0 0.0
    %377 = vmatpush1.msra.mxu0 %v343
    %378 = vmatprep.subr.mxu0 0.0
    %379 = vmatpush1.msra.mxu0 %v342
    %380 = vmatprep.subr.mxu0 0.0
    %381 = vmatpush1.msra.mxu0 %v341
    %382 = vmatprep.subr.mxu0 0.0
    %383 = vmatpush1.msra.mxu0 %v340
    %384 = vmatprep.subr.mxu0 0.0
    %385 = vmatpush1.msra.mxu0 %v339
    %386 = vmatprep.subr.mxu0 0.0
    %387 = vmatpush1.msra.mxu0 %v338
    %388 = vmatprep.subr.mxu0 0.0
    %389 = vmatpush1.msra.mxu0 %v337
    %390 = vmatprep.subr.mxu0 0.0
    %391 = vmatpush2.msra.mxu0 0.0
    %392 = vmatprep.subr.mxu0 0.0
    %393 = vmatpush2.msra.mxu0 0.0
    %394 = vmatprep.subr.mxu0 0.0
    %395 = vmatpush2.msra.mxu0 0.0
    %396 = vmatprep.subr.mxu0 0.0
    %397 = vmatpush2.msra.mxu0 0.0
    %398 = vmatprep.subr.mxu0 0.0
    %399 = vmatpush2.msra.mxu0 0.0
    %400 = vmatprep.subr.mxu0 0.0
    %401 = vmatpush2.msra.mxu0 0.0
    %402 = vmatprep.subr.mxu0 0.0
    %403 = vmatpush2.msra.mxu0 0.0
    %404 = vmatprep.subr.mxu0 0.0
    %405 = vmatpush2.msra.mxu0 0.0
    %406 = vmatprep.subr.mxu0 0.0
    %407 = vmatpush2.msra.mxu0 0.0
    %408 = vmatprep.subr.mxu0 0.0
    %409 = vmatpush2.msra.mxu0 0.0
    %410 = vmatprep.subr.mxu0 0.0
    %411 = vmatpush2.msra.mxu0 0.0
    %412 = vmatprep.subr.mxu0 0.0
    %413 = vmatpush2.msra.mxu0 0.0
    %414 = vmatprep.subr.mxu0 0.0
    %415 = vmatpush2.msra.mxu0 0.0
    %416 = vmatprep.subr.mxu0 0.0
    %417 = vmatpush2.msra.mxu0 0.0
    %418 = vmatprep.subr.mxu0 0.0
    %419 = vmatpush2.msra.mxu0 0.0
    %420 = vmatprep.subr.mxu0 0.0
    %421 = vmatpush2.msra.mxu0 0.0
    %422 = vmatprep.mubr.f32.mxu0 0.0
    %423 = vmatmul.mubr.f32.gmra.mxu0 %v335
    %v424 = vpop.f32.mrf.mxu0
    %v425 = vadd.f32 %v357, %v424
    %v426 = vpop.f32.mrf.mxu0
    %427 = vdwg.mxu0
    %v428 = vmax.f32 %v425, 0.0
    %v429 = vrot.slane %v428, 4
    %v430 = vadd.f32 %v428, %v429
    %v431 = vrot.slane %v430, 2
    %v432 = vadd.f32 %v430, %v431
    %v433 = vrot.slane %v432, 1
    %v434 = vadd.f32 %v432, %v433
    %v435 = vmul.f32 %v434, %v187
    %v436 = vsub.f32 %v428, %v435
    %v437 = vmul.f32 %v436, %v436
    %v438 = vrot.slane %v437, 4
    %v439 = vadd.f32 %v437, %v438
    %v440 = vrot.slane %v439, 2
    %v441 = vadd.f32 %v439, %v440
    %v442 = vrot.slane %v441, 1
    %v443 = vadd.f32 %v441, %v442
    %v444 = vmul.f32 %v443, %v187
    %v445 = vld [vmem:[#allocation7 + $0x2] sm:$0x1]
    %v446 = vadd.f32 %v444, 1e-05
    %v447 = vrsqrt.pop %v446
    %v448 = vmul.f32 %v445, %v447
    %v449 = vlaneseq
    %v450 = vshrl.u32 %v449, 7
    %v451 = vsub.s32 0, %v450
    %v452 = vrot.slane %v448, %v451
    %v453 = vmul.f32 %v436, %v452
    %v454 = vld [vmem:[%s3 + $0x2] sm:$0x1]
    %v455 = vlaneseq
    %v456 = vshrl.u32 %v455, 7
    %v457 = vsub.s32 0, %v456
    %v458 = vrot.slane %v454, %v457
    %v459 = vadd.f32 %v453, %v458
    %s460 = scalar_lea.vmem [#allocation8], 256
    %v461 = vld [vmem:[%s460] sm:$0xff]
    %v462 = vld [vmem:[%s460 + $0x8] sm:$0xff]
    %v463 = vld [vmem:[%s460 + $0x10] sm:$0xff]
    %v464 = vld [vmem:[%s460 + $0x18] sm:$0xff]
    %v465 = vld [vmem:[%s460 + $0x20] sm:$0xff]
    %v466 = vld [vmem:[%s460 + $0x28] sm:$0xff]
    %v467 = vld [vmem:[%s460 + $0x30] sm:$0xff]
    %v468 = vld [vmem:[%s460 + $0x38] sm:$0xff]
    %v469 = vld [vmem:[%s460 + $0x40] sm:$0xff]
    %v470 = vld [vmem:[%s460 + $0x48] sm:$0xff]
    %v471 = vld [vmem:[%s460 + $0x50] sm:$0xff]
    %v472 = vld [vmem:[%s460 + $0x58] sm:$0xff]
    %v473 = vld [vmem:[%s460 + $0x60] sm:$0xff]
    %v474 = vld [vmem:[%s460 + $0x68] sm:$0xff]
    %v475 = vld [vmem:[%s460 + $0x70] sm:$0xff]
    %v476 = vld [vmem:[%s460 + $0x78] sm:$0xff]
    %v477 = vld [vmem:[%s5 + $0x2] sm:$0x1]
    %v478 = vlaneseq
    %v479 = vshrl.u32 %v478, 7
    %v480 = vsub.s32 0, %v479
    %v481 = vrot.slane %v477, %v480
    %482 = vmatprep.subr.mxu0 0.0
    %483 = vmatpush1.msra.mxu0 %v476
    %484 = vmatprep.subr.mxu0 0.0
    %485 = vmatpush1.msra.mxu0 %v475
    %486 = vmatprep.subr.mxu0 0.0
    %487 = vmatpush1.msra.mxu0 %v474
    %488 = vmatprep.subr.mxu0 0.0
    %489 = vmatpush1.msra.mxu0 %v473
    %490 = vmatprep.subr.mxu0 0.0
    %491 = vmatpush1.msra.mxu0 %v472
    %492 = vmatprep.subr.mxu0 0.0
    %493 = vmatpush1.msra.mxu0 %v471
    %494 = vmatprep.subr.mxu0 0.0
    %495 = vmatpush1.msra.mxu0 %v470
    %496 = vmatprep.subr.mxu0 0.0
    %497 = vmatpush1.msra.mxu0 %v469
    %498 = vmatprep.subr.mxu0 0.0
    %499 = vmatpush1.msra.mxu0 %v468
    %500 = vmatprep.subr.mxu0 0.0
    %501 = vmatpush1.msra.mxu0 %v467
    %502 = vmatprep.subr.mxu0 0.0
    %503 = vmatpush1.msra.mxu0 %v466
    %504 = vmatprep.subr.mxu0 0.0
    %505 = vmatpush1.msra.mxu0 %v465
    %506 = vmatprep.subr.mxu0 0.0
    %507 = vmatpush1.msra.mxu0 %v464
    %508 = vmatprep.subr.mxu0 0.0
    %509 = vmatpush1.msra.mxu0 %v463
    %510 = vmatprep.subr.mxu0 0.0
    %511 = vmatpush1.msra.mxu0 %v462
    %512 = vmatprep.subr.mxu0 0.0
    %513 = vmatpush1.msra.mxu0 %v461
    %514 = vmatprep.subr.mxu0 0.0
    %515 = vmatpush2.msra.mxu0 0.0
    %516 = vmatprep.subr.mxu0 0.0
    %517 = vmatpush2.msra.mxu0 0.0
    %518 = vmatprep.subr.mxu0 0.0
    %519 = vmatpush2.msra.mxu0 0.0
    %520 = vmatprep.subr.mxu0 0.0
    %521 = vmatpush2.msra.mxu0 0.0
    %522 = vmatprep.subr.mxu0 0.0
    %523 = vmatpush2.msra.mxu0 0.0
    %524 = vmatprep.subr.mxu0 0.0
    %525 = vmatpush2.msra.mxu0 0.0
    %526 = vmatprep.subr.mxu0 0.0
    %527 = vmatpush2.msra.mxu0 0.0
    %528 = vmatprep.subr.mxu0 0.0
    %529 = vmatpush2.msra.mxu0 0.0
    %530 = vmatprep.subr.mxu0 0.0
    %531 = vmatpush2.msra.mxu0 0.0
    %532 = vmatprep.subr.mxu0 0.0
    %533 = vmatpush2.msra.mxu0 0.0
    %534 = vmatprep.subr.mxu0 0.0
    %535 = vmatpush2.msra.mxu0 0.0
    %536 = vmatprep.subr.mxu0 0.0
    %537 = vmatpush2.msra.mxu0 0.0
    %538 = vmatprep.subr.mxu0 0.0
    %539 = vmatpush2.msra.mxu0 0.0
    %540 = vmatprep.subr.mxu0 0.0
    %541 = vmatpush2.msra.mxu0 0.0
    %542 = vmatprep.subr.mxu0 0.0
    %543 = vmatpush2.msra.mxu0 0.0
    %544 = vmatprep.subr.mxu0 0.0
    %545 = vmatpush2.msra.mxu0 0.0
    %546 = vmatprep.mubr.f32.mxu0 0.0
    %547 = vmatmul.mubr.f32.gmra.mxu0 %v459
    %v548 = vpop.f32.mrf.mxu0
    %v549 = vadd.f32 %v481, %v548
    %v550 = vpop.f32.mrf.mxu0
    %551 = vdwg.mxu0
    %v552 = vmax.f32 %v549, 0.0
    %v553 = vld [vmem:[#allocation10] sm:$0xff]
    %v554 = vld [vmem:[#allocation10 + $0x8] sm:$0xff]
    %v555 = vld [vmem:[#allocation10 + $0x10] sm:$0xff]
    %v556 = vld [vmem:[#allocation10 + $0x18] sm:$0xff]
    %v557 = vld [vmem:[#allocation10 + $0x20] sm:$0xff]
    %v558 = vld [vmem:[#allocation10 + $0x28] sm:$0xff]
    %v559 = vld [vmem:[#allocation10 + $0x30] sm:$0xff]
    %v560 = vld [vmem:[#allocation10 + $0x38] sm:$0xff]
    %v561 = vld [vmem:[#allocation10 + $0x40] sm:$0xff]
    %v562 = vld [vmem:[#allocation10 + $0x48] sm:$0xff]
    %v563 = vld [vmem:[#allocation10 + $0x50] sm:$0xff]
    %v564 = vld [vmem:[#allocation10 + $0x58] sm:$0xff]
    %v565 = vld [vmem:[#allocation10 + $0x60] sm:$0xff]
    %v566 = vld [vmem:[#allocation10 + $0x68] sm:$0xff]
    %v567 = vld [vmem:[#allocation10 + $0x70] sm:$0xff]
    %v568 = vld [vmem:[#allocation10 + $0x78] sm:$0xff]
    %v569 = vld [vmem:[%s7] sm:$0x1]
    %v571 = vlaneseq
    %v572 = vshrl.u32 %v571, 7
    %v573 = vsub.s32 0, %v572
    %v574 = vrot.slane %v569, %v573
    %576 = vmatprep.subr.mxu0 0.0
    %577 = vmatpush1.msra.mxu0 %v568
    %578 = vmatprep.subr.mxu0 0.0
    %579 = vmatpush1.msra.mxu0 %v567
    %580 = vmatprep.subr.mxu0 0.0
    %581 = vmatpush1.msra.mxu0 %v566
    %582 = vmatprep.subr.mxu0 0.0
    %583 = vmatpush1.msra.mxu0 %v565
    %584 = vmatprep.subr.mxu0 0.0
    %585 = vmatpush1.msra.mxu0 %v564
    %586 = vmatprep.subr.mxu0 0.0
    %587 = vmatpush1.msra.mxu0 %v563
    %588 = vmatprep.subr.mxu0 0.0
    %589 = vmatpush1.msra.mxu0 %v562
    %590 = vmatprep.subr.mxu0 0.0
    %591 = vmatpush1.msra.mxu0 %v561
    %592 = vmatprep.subr.mxu0 0.0
    %593 = vmatpush1.msra.mxu0 %v560
    %594 = vmatprep.subr.mxu0 0.0
    %595 = vmatpush1.msra.mxu0 %v559
    %596 = vmatprep.subr.mxu0 0.0
    %597 = vmatpush1.msra.mxu0 %v558
    %598 = vmatprep.subr.mxu0 0.0
    %599 = vmatpush1.msra.mxu0 %v557
    %600 = vmatprep.subr.mxu0 0.0
    %601 = vmatpush1.msra.mxu0 %v556
    %602 = vmatprep.subr.mxu0 0.0
    %603 = vmatpush1.msra.mxu0 %v555
    %604 = vmatprep.subr.mxu0 0.0
    %605 = vmatpush1.msra.mxu0 %v554
    %606 = vmatprep.subr.mxu0 0.0
    %607 = vmatpush1.msra.mxu0 %v553
    %608 = vmatprep.subr.mxu0 0.0
    %609 = vmatpush2.msra.mxu0 0.0
    %610 = vmatprep.subr.mxu0 0.0
    %611 = vmatpush2.msra.mxu0 0.0
    %612 = vmatprep.subr.mxu0 0.0
    %613 = vmatpush2.msra.mxu0 0.0
    %614 = vmatprep.subr.mxu0 0.0
    %615 = vmatpush2.msra.mxu0 0.0
    %616 = vmatprep.subr.mxu0 0.0
    %617 = vmatpush2.msra.mxu0 0.0
    %618 = vmatprep.subr.mxu0 0.0
    %619 = vmatpush2.msra.mxu0 0.0
    %620 = vmatprep.subr.mxu0 0.0
    %621 = vmatpush2.msra.mxu0 0.0
    %622 = vmatprep.subr.mxu0 0.0
    %623 = vmatpush2.msra.mxu0 0.0
    %624 = vmatprep.subr.mxu0 0.0
    %625 = vmatpush2.msra.mxu0 0.0
    %626 = vmatprep.subr.mxu0 0.0
    %627 = vmatpush2.msra.mxu0 0.0
    %628 = vmatprep.subr.mxu0 0.0
    %629 = vmatpush2.msra.mxu0 0.0
    %630 = vmatprep.subr.mxu0 0.0
    %631 = vmatpush2.msra.mxu0 0.0
    %632 = vmatprep.subr.mxu0 0.0
    %633 = vmatpush2.msra.mxu0 0.0
    %634 = vmatprep.subr.mxu0 0.0
    %635 = vmatpush2.msra.mxu0 0.0
    %636 = vmatprep.subr.mxu0 0.0
    %637 = vmatpush2.msra.mxu0 0.0
    %638 = vmatprep.subr.mxu0 0.0
    %639 = vmatpush2.msra.mxu0 0.0
    %640 = vmatprep.mubr.f32.mxu0 0.0
    %641 = vmatmul.mubr.f32.gmra.mxu0 %v552
    %v642 = vpop.f32.mrf.mxu0
    %v643 = vadd.f32 %v574, %v642
    %v644 = vpop.f32.mrf.mxu0
    %645 = vdwg.mxu0
    %646 = vst [vmem:[#allocation11] sm:$0xff] %v643
    // Predicated region
    $region54: #{tpu_custom_call.1} parent=1 // pred_check
      _
    $region55: #{tpu_custom_call.1} parent=1 // pred_check_branch
      %648 = sbr.rel (0) target = $region57
    $region56: #{tpu_custom_call.1} parent=1 // pred_region
      %s650 = ssub.s32 128, 128
      %651 = vsyncadd [#allocation4], %s650
      %s653 = sshll.u32 [#allocation11], 4
      %s654 = int_to_ptr.vmem [resolvable:$true] %s653
      %656 = dma.vmem_to_hbm [thread:$0]  %s654, 128, %s8, [#allocation4]
    $region57: #{tpu_custom_call.1} parent=1 // pred_fallthru
      _
    // Predicated region
    $region58: #{tpu_custom_call.1} parent=1 // pred_check
      _
    $region59: #{tpu_custom_call.1} parent=1 // pred_check_branch
      %658 = sbr.rel (0) target = $region61
    $region60: #{tpu_custom_call.1} parent=1 // pred_region
      %659 = dma.done [#allocation4], 128
    $region61: #{tpu_custom_call.1} parent=1 // pred_fallthru
      _
    %660 = vsyncpa [#allocation3], 1
    %661 = vsyncpa [#allocation6], 1
    %662 = vsyncpa [#allocation9], 1
    %663 = vsyncpa [#allocation4], 1

</llo_original>
